<compile_context>
chip_gen: v6e
topology: v6e:2x2x1
jax: 0.10.0
libtpu: 0.0.40
codegen_flags: <defaults>
</compile_context>

<pallas_src>
import functools

import jax
import jax.numpy as jnp
from jax import lax
from jax.experimental import pallas as pl
from jax.experimental.pallas import tpu as pltpu


def _sublane_multiple(dtype):
    # Minimum second-to-minor tile multiple per dtype packing:
    # 8 for 4-byte, 16 for 2-byte, 32 for 1-byte element types.
    return max(8, 32 // max(1, jnp.dtype(dtype).itemsize))


def _choose_tile_n(n, c, dtype, target_bytes=8 << 20):
    """Row tile sized purely from a byte budget (no row cap), sublane-aligned.

    ~8 MiB x-blocks keep the pipeline at ~85%+ of HBM roofline on v5e/v6e/v7x;
    callers may pass an explicit tile_n to sweep per generation.
    """
    item = jnp.dtype(dtype).itemsize
    sub = _sublane_multiple(dtype)
    rows = max(sub, target_bytes // max(1, c * item))
    rows = max(sub, (rows // sub) * sub)          # sublane-aligned for the dtype
    if rows >= n:
        return int(n)                             # single full-extent block (always legal)
    return int(rows)


def _vmem_limit_bytes(tile_n, c, dtype):
    blk = tile_n * c * jnp.dtype(dtype).itemsize
    # 2 pipeline buffers for the x block + labels/outputs + headroom; clamp to a
    # range valid on v5e/v6e (128 MiB physical) and v7x (64 MiB physical).
    return int(min(max(2 * blk + (8 << 20), 32 << 20), 48 << 20))


def _ce_loss_kernel(y_ref, x_ref, psum_ref, *, n_total):
    # y_ref: (tile_n, 1) int32; x_ref: (tile_n, C) native dtype;
    # psum_ref: (1, 1, 1) f32 partial sum for this row tile.
    i = pl.program_id(0)
    x = x_ref[...]                                   # native dtype, no full-tile cast
    y = y_ref[...]
    tn, c = x.shape

    # One-hot gather of x[r, y_r] in the native dtype (exactly one nonzero/row).
    col = lax.broadcasted_iota(jnp.int32, (tn, c), 1)
    picked = jnp.sum(jnp.where(col == y, x, jnp.zeros_like(x)),
                     axis=1, keepdims=True)          # (tile_n, 1)
    picked = picked.astype(jnp.float32)              # cast AFTER the gather

    # Mask rows past N (ragged last tile); clamp before the log so padded rows
    # never generate NaN/inf.
    row = lax.broadcasted_iota(jnp.int32, (tn, 1), 0) + i * tn
    valid = row < n_total
    picked = jnp.where(valid, picked, 1.0)
    per_row = jnp.where(valid, -jnp.log(picked), 0.0)

    psum_ref[...] = jnp.sum(per_row, axis=0, keepdims=True).reshape(1, 1, 1)


def _argmax_kernel(x_ref, out_ref):
    # x_ref: (tile_n, C) native dtype; out_ref: (tile_n, 1) int32.
    # Note: a lane-dense (1, tile_n) output would cut masked-store ops for C<128,
    # but needs a sublane->lane relayout in-kernel; the column layout is kept as
    # the known-good, output-traffic is only N*4 bytes.
    x = x_ref[...]
    tn, c = x.shape
    col = lax.broadcasted_iota(jnp.int32, (tn, c), 1)
    m = jnp.max(x, axis=1, keepdims=True)
    idx = jnp.where(x == m, col, jnp.int32(c))       # first index attaining the max
    out_ref[...] = jnp.min(idx, axis=1, keepdims=True)


def cssr_criterion(x, y=None, pred=False, tile_n=None, small_to_jnp=True):
    """JAX/Pallas equivalent of CSSRCriterion.forward.

    x: (N, C) strictly-positive class probabilities (any float dtype).
    y: (N,) integer labels (loss path only).
    pred: if True return argmax over classes, else mean of -log(x[i, y_i]).
    """
    n, c = x.shape

    # Plain-XLA fast path: pallas_call dispatch + pipeline startup costs a few us,
    # which dominates for small problems.
    if small_to_jnp and n * c <= (1 << 17):
        if pred:
            return jnp.argmax(x, axis=1).astype(jnp.int32)
        vals = x[jnp.arange(n), y.astype(jnp.int32)].astype(jnp.float32)
        return jnp.mean(-jnp.log(vals))

    if tile_n is None:
        tile_n = _choose_tile_n(n, c, x.dtype)
    num_tiles = pl.cdiv(n, tile_n)
    itemsize = jnp.dtype(x.dtype).itemsize
    cparams = pltpu.CompilerParams(
        dimension_semantics=("parallel",),
        vmem_limit_bytes=_vmem_limit_bytes(tile_n, c, x.dtype))

    if pred:
        cost = pl.CostEstimate(
            flops=4 * n * c, transcendentals=0,
            bytes_accessed=n * c * itemsize + n * 4)
        out = pl.pallas_call(
            _argmax_kernel,
            out_shape=jax.ShapeDtypeStruct((n, 1), jnp.int32),
            grid=(num_tiles,),
            in_specs=[pl.BlockSpec((tile_n, c), lambda i: (i, 0))],
            out_specs=pl.BlockSpec((tile_n, 1), lambda i: (i, 0)),
            compiler_params=cparams,
            cost_estimate=cost,
        )(x)
        return out.reshape(n)

    y2 = jnp.reshape(y, (n, 1)).astype(jnp.int32)
    kernel = functools.partial(_ce_loss_kernel, n_total=n)
    cost = pl.CostEstimate(
        flops=3 * n * c, transcendentals=n,
        bytes_accessed=n * c * itemsize + n * 4 + num_tiles * 4)
    psums = pl.pallas_call(
        kernel,
        out_shape=jax.ShapeDtypeStruct((num_tiles, 1, 1), jnp.float32),
        grid=(num_tiles,),
        in_specs=[
            pl.BlockSpec((tile_n, 1), lambda i: (i, 0)),
            pl.BlockSpec((tile_n, c), lambda i: (i, 0)),
        ],
        out_specs=pl.BlockSpec((1, 1, 1), lambda i: (i, 0, 0)),
        compiler_params=cparams,
        cost_estimate=cost,
    )(y2, x)
    return jnp.sum(psums) / n


if __name__ == "__main__":
    key = jax.random.PRNGKey(0)
    kx, ky, kx2, ky2 = jax.random.split(key, 4)

    # --- small case (classifier-head shape); force the Pallas path ---
    N, C = 8, 32
    # x must be strictly positive (probabilities fed to log()).
    x = jax.nn.softmax(jax.random.normal(kx, (N, C), dtype=jnp.float32), axis=1)
    y = jax.random.randint(ky, (N,), 0, C, dtype=jnp.int32)

    loss = jax.block_until_ready(cssr_criterion(x, y, small_to_jnp=False))
    preds = jax.block_until_ready(cssr_criterion(x, pred=True, small_to_jnp=False))

    ref_loss = jnp.mean(-jnp.log(x[jnp.arange(N), y]))
    ref_pred = jnp.argmax(x, axis=1)
    assert jnp.allclose(loss, ref_loss, rtol=1e-5, atol=1e-5), (loss, ref_loss)
    assert jnp.array_equal(preds, ref_pred), (preds, ref_pred)

    # --- multi-tile case with a ragged last tile (grid + row masking) ---
    N2, C2 = 300, 160
    x2 = jax.nn.softmax(jax.random.normal(kx2, (N2, C2), dtype=jnp.float32), axis=1)
    y2 = jax.random.randint(ky2, (N2,), 0, C2, dtype=jnp.int32)

    loss2 = jax.block_until_ready(
        cssr_criterion(x2, y2, tile_n=128, small_to_jnp=False))
    preds2 = jax.block_until_ready(
        cssr_criterion(x2, pred=True, tile_n=128, small_to_jnp=False))

    ref_loss2 = jnp.mean(-jnp.log(x2[jnp.arange(N2), y2]))
    ref_pred2 = jnp.argmax(x2, axis=1)
    assert jnp.allclose(loss2, ref_loss2, rtol=1e-5, atol=1e-5), (loss2, ref_loss2)
    assert jnp.array_equal(preds2, ref_pred2), (preds2, ref_pred2)

    # --- auto byte-budget tiling (single full-extent block covering all rows) ---
    loss2b = jax.block_until_ready(cssr_criterion(x2, y2, small_to_jnp=False))
    preds2b = jax.block_until_ready(cssr_criterion(x2, pred=True, small_to_jnp=False))
    assert jnp.allclose(loss2b, ref_loss2, rtol=1e-5, atol=1e-5), (loss2b, ref_loss2)
    assert jnp.array_equal(preds2b, ref_pred2), (preds2b, ref_pred2)

    # --- native bf16 path (post-gather cast, 16-row sublane alignment) ---
    x2_bf16 = x2.astype(jnp.bfloat16)
    preds_bf16 = jax.block_until_ready(
        cssr_criterion(x2_bf16, pred=True, tile_n=128, small_to_jnp=False))
    assert jnp.array_equal(preds_bf16, jnp.argmax(x2_bf16, axis=1))
    loss_bf16 = jax.block_until_ready(
        cssr_criterion(x2_bf16, y2, tile_n=128, small_to_jnp=False))
    ref_loss_bf16 = jnp.mean(
        -jnp.log(x2_bf16[jnp.arange(N2), y2].astype(jnp.float32)))
    assert jnp.allclose(loss_bf16, ref_loss_bf16, rtol=1e-4, atol=1e-4), (
        loss_bf16, ref_loss_bf16)

    # --- default dispatch (raised small_to_jnp cutoff -> plain-XLA) agrees ---
    loss_xla = jax.block_until_ready(cssr_criterion(x2, y2))
    preds_xla = jax.block_until_ready(cssr_criterion(x2, pred=True))
    assert jnp.allclose(loss_xla, ref_loss2, rtol=1e-5, atol=1e-5)
    assert jnp.array_equal(preds_xla, ref_pred2)

    print("KERNEL_OK")
</pallas_src>

<mosaic_0001>
module attributes {stable_mosaic.version = 11 : i64} {
  func.func @_ce_loss_kernel(%arg0: i32, %arg1: memref<8x1xi32, #tpu.memory_space<vmem>>, %arg2: memref<8x32xf32, #tpu.memory_space<vmem>>, %arg3: memref<1x1x1xf32, #tpu.memory_space<vmem>>) attributes {dimension_semantics = [#tpu.dimension_semantics<parallel>], iteration_bounds = array<i64: 1>, scalar_prefetch = 0 : i64, scratch_operands = 0 : i64, tpu.core_type = #tpu.core_type<tc>, window_params = [{transform_indices = @transform_0, window_bounds = array<i64: 8, 1>}, {transform_indices = @transform_1, window_bounds = array<i64: 8, 32>}, {transform_indices = @transform_2, window_bounds = array<i64: 1, 1, 1>}]} {
    %c0 = arith.constant 0 : index
    %c0_0 = arith.constant 0 : index
    %0 = vector.load %arg2[%c0, %c0_0] : memref<8x32xf32, #tpu.memory_space<vmem>>, vector<8x32xf32>
    %c0_1 = arith.constant 0 : index
    %c0_2 = arith.constant 0 : index
    %1 = vector.load %arg1[%c0_1, %c0_2] : memref<8x1xi32, #tpu.memory_space<vmem>>, vector<8x1xi32>
    %2 = tpu.iota {dimensions = array<i32: 1>} : vector<8x32xi32>
    %3 = vector.broadcast %1 : vector<8x1xi32> to vector<8x32xi32>
    %4 = arith.cmpi eq, %2, %3 : vector<8x32xi32>
    %cst = arith.constant 0.000000e+00 : f32
    %5 = vector.broadcast %cst : f32 to vector<8x32xf32>
    %6 = arith.select %4, %0, %5 : vector<8x32xi1>, vector<8x32xf32>
    %cst_3 = arith.constant dense<0.000000e+00> : vector<8xf32>
    %7 = vector.multi_reduction <add>, %6, %cst_3 [1] : vector<8x32xf32> to vector<8xf32>
    %8 = vector.shape_cast %7 : vector<8xf32> to vector<8x1xf32>
    %9 = tpu.iota {dimensions = array<i32: 0>} : vector<8x1xi32>
    %c8_i32 = arith.constant 8 : i32
    %10 = arith.muli %arg0, %c8_i32 : i32
    %11 = vector.broadcast %10 : i32 to vector<8x1xi32>
    %12 = arith.addi %9, %11 : vector<8x1xi32>
    %c8_i32_4 = arith.constant 8 : i32
    %13 = vector.broadcast %c8_i32_4 : i32 to vector<8x1xi32>
    %14 = arith.cmpi slt, %12, %13 : vector<8x1xi32>
    %cst_5 = arith.constant 1.000000e+00 : f32
    %15 = vector.broadcast %cst_5 : f32 to vector<8x1xf32>
    %16 = arith.select %14, %8, %15 : vector<8x1xi1>, vector<8x1xf32>
    %17 = math.log %16 : vector<8x1xf32>
    %cst_6 = arith.constant 0.000000e+00 : f32
    %18 = vector.broadcast %cst_6 : f32 to vector<8x1xf32>
    %19 = arith.subf %18, %17 : vector<8x1xf32>
    %cst_7 = arith.constant 0.000000e+00 : f32
    %20 = vector.broadcast %cst_7 : f32 to vector<8x1xf32>
    %21 = arith.select %14, %19, %20 : vector<8x1xi1>, vector<8x1xf32>
    %cst_8 = arith.constant dense<0.000000e+00> : vector<1xf32>
    %22 = vector.multi_reduction <add>, %21, %cst_8 [0] : vector<8x1xf32> to vector<1xf32>
    %23 = vector.shape_cast %22 : vector<1xf32> to vector<1x1xf32>
    %24 = vector.shape_cast %23 : vector<1x1xf32> to vector<1x1x1xf32>
    %c0_9 = arith.constant 0 : index
    %c0_10 = arith.constant 0 : index
    %c0_11 = arith.constant 0 : index
    %25 = vector.load %arg3[%c0_9, %c0_10, %c0_11] : memref<1x1x1xf32, #tpu.memory_space<vmem>>, vector<1x1x1xf32>
    tpu.vector_store %arg3[%c0_9, %c0_10, %c0_11], %24 {strides = array<i32>} : memref<1x1x1xf32, #tpu.memory_space<vmem>>, vector<1x1x1xf32>,
    return
  }
  func.func @transform_0(%arg0: i32) -> (i32, i32) {
    %c0_i32 = arith.constant 0 : i32
    %c0_i32_0 = arith.constant 0 : i32
    return %arg0, %c0_i32 : i32, i32
  }
  func.func @transform_1(%arg0: i32) -> (i32, i32) {
    %c0_i32 = arith.constant 0 : i32
    %c0_i32_0 = arith.constant 0 : i32
    return %arg0, %c0_i32 : i32, i32
  }
  func.func @transform_2(%arg0: i32) -> (i32, i32, i32) {
    %c0_i32 = arith.constant 0 : i32
    %c0_i32_0 = arith.constant 0 : i32
    %c0_i32_1 = arith.constant 0 : i32
    return %arg0, %c0_i32, %c0_i32_0 : i32, i32, i32
  }
}

</mosaic_0001>

<llo_original>
// kernel: tpu_custom_call.1
$region0: #{tpu_custom_call.1}
  #allocation0 [shape = 'u32[]', space=smem, size = 0x4, offset = 0x4, fixed_abs, tag = 'smem constant byte address 0x4 - core index']
  #allocation1 [shape = 'u32[144,128]{1,0:T(1,128)}', space=vmem, size = 0x12000, scoped, tag = 'internal scratch']
  %s0 = inlined_call_operand.vmem [shape: s32[8,1], index: 0, kind: input, shape index: {}]
  %s1 = inlined_call_operand.vmem [shape: f32[8,32], index: 1, kind: input, shape index: {}]
  %s2 = inlined_call_operand.hbm [shape: f32[1,1,1], index: 2, kind: output, shape index: {}]
  %s3 = sld [smem:[#allocation0]]
  $region18: #{tpu_custom_call.1} parent=0
    _
  %s5 = ssub.s32 1, %s3
  %s6 = scalar_select 0, %s5, %s3
  $region1: #{tpu_custom_call.1} parent=0
    #allocation2 [shape = 'u8[512]{0}', space=vmem, size = 0x400, scoped, tag = 'output window, operand 0, single buffered']
    #allocation3 [shape = 's32[1]{0}', space=sflag, size = 0x4, scoped, tag = 'scoped memory for tpu_custom_call.1']
    %7 = vsyncpa [#allocation3], 0
    // Predicated region
    $region2: #{tpu_custom_call.1} parent=1 // pred_check
      _
    $region3: #{tpu_custom_call.1} parent=1 // pred_check_branch
      %9 = sbr.rel (0) target = $region5
    $region4: #{tpu_custom_call.1} parent=1 // pred_region
      _
    $region5: #{tpu_custom_call.1} parent=1 // pred_fallthru
      _
    // Predicated region
    $region6: #{tpu_custom_call.1} parent=1 // pred_check
      _
    $region7: #{tpu_custom_call.1} parent=1 // pred_check_branch
      %11 = sbr.rel (0) target = $region9
    $region8: #{tpu_custom_call.1} parent=1 // pred_region
      _
    $region9: #{tpu_custom_call.1} parent=1 // pred_fallthru
      _
    %v12 = vld [vmem:[%s1] sm:$0xff]
    %v13 = vld [vmem:[%s0] sm:$0xff]
    %v14 = vlaneseq
    %v15 = vand.u32 %v14, 127
    %16 = vset.pattern.permute.xlu0 0
    %17 = vperm.xlu0 %16, %v13
    %v18 = vpop.permute.xlu0 %17
    %vm19 = vcmp.eq.s32.totalorder %v15, %v18
    %v20 = vsel %vm19, %v12, 0.0
    %vm21 = vcmask 261120
    %v22 = vsel %vm21, %v20, 0.0
    %23 = vadd.xlane.f32.xlu0 %v22
    %v24 = vpop.xlane.xlu0 %23
    %v25 = vlaneseq
    %v26 = vshrl.u32 %v25, 7
    %s27 = smul.u32 0, 8
    %v28 = vstv %s27
    %v29 = vadd.s32 %v26, %v28
    %vm30 = vcmp.lt.s32.totalorder %v29, 8
    %v31 = vsel %vm30, %v24, 1.0
    %v32 = vlog2.pop %v31
    %v33 = vmul.f32 %v32, 0.6931472
    %v34 = vsub.f32 0.0, %v33
    %v35 = vsel %vm30, %v34, 0.0
    %v36 = vrot.slane %v35, 4
    %v37 = vadd.f32 %v35, %v36
    %v38 = vrot.slane %v37, 2
    %v39 = vadd.f32 %v37, %v38
    %v40 = vrot.slane %v39, 1
    %v41 = vadd.f32 %v39, %v40
    %vm42 = vcmask 0
    %43 = vst.msk [vmem:[#allocation2] sm:$0x1] %vm42, %v41
    // Predicated region
    $region10: #{tpu_custom_call.1} parent=1 // pred_check
      _
    $region11: #{tpu_custom_call.1} parent=1 // pred_check_branch
      %45 = sbr.rel (0) target = $region13
    $region12: #{tpu_custom_call.1} parent=1 // pred_region
      %s47 = ssub.s32 16, 16
      %48 = vsyncadd [#allocation3], %s47
      %s50 = sshll.u32 [#allocation2], 4
      %s51 = int_to_ptr.vmem [resolvable:$true] %s50
      %53 = dma.vmem_to_hbm [thread:$0]  %s51, 16, %s2, [#allocation3]
    $region13: #{tpu_custom_call.1} parent=1 // pred_fallthru
      _
    // Predicated region
    $region14: #{tpu_custom_call.1} parent=1 // pred_check
      _
    $region15: #{tpu_custom_call.1} parent=1 // pred_check_branch
      %55 = sbr.rel (0) target = $region17
    $region16: #{tpu_custom_call.1} parent=1 // pred_region
      %56 = dma.done [#allocation3], 16
    $region17: #{tpu_custom_call.1} parent=1 // pred_fallthru
      _
    %57 = vsyncpa [#allocation3], 1

</llo_original>
